<compile_context>
chip_gen: v6e
topology: v6e:2x2x1
jax: 0.10.0
libtpu: 0.0.40
codegen_flags: <defaults>
</compile_context>

<pallas_src>
import jax
import jax.numpy as jnp
from jax.experimental import pallas as pl
from jax.experimental.pallas import tpu as pltpu

DEPTH = 8
N_INPUT = 1
_N_PARAMS = DEPTH * 2 * N_INPUT          # 16
_PACKED_LANES = 3 + _N_PARAMS            # [theta, fc_w, fc_b, params...] -> 19
_TWO_PI = 2.0 * jnp.pi


def hybrid_vqc_kernel(packed_ref, out_ref):
    # packed_ref: (1, 19) f32 lane-row = [theta, fc_w, fc_b, params[0..15]].
    s = packed_ref[...]                          # one vreg load
    theta = s[0:1, 0:1]                          # (1, 1)
    w = s[0:1, 1:2]                              # (1, 1)
    b = s[0:1, 2:3]                              # (1, 1)

    # All 16 gates are RX on the same single wire, so they compose into one
    # RX(sum(params)).  After RY(theta)|0>:  <Z> = cos(theta) * cos(sum(params)).
    phi = jnp.sum(s[0:1, 3:3 + _N_PARAMS], axis=1, keepdims=True)       # lane-only reduce
    # Range-reduce the summed angle (|phi| can reach ~100 rad) before the EUP cos.
    phi = phi - _TWO_PI * jnp.round(phi * (1.0 / _TWO_PI))

    z = jnp.cos(theta) * jnp.cos(phi)            # 2 EUP transcendentals

    # fc: Linear(1, 1) on q_output.view(1, -1)  -> plain VPU FMA, no MXU.
    out_ref[...] = w * z + b


@jax.jit
def hybrid_vqc(x, params, fc_w, fc_b):
    """x: (1, 1) f32, params: (8, 2) f32, fc_w: (1, 1) f32, fc_b: (1, 1) f32 -> (1, 1) f32."""
    assert N_INPUT == 1, "closed-form RX composition only valid for a single wire"

    # Pack everything into one lane-dense row -> a single tiny input DMA.
    packed = jnp.concatenate(
        [
            x.reshape(1, 1).astype(jnp.float32),
            fc_w.reshape(1, 1).astype(jnp.float32),
            fc_b.reshape(1, 1).astype(jnp.float32),
            params.reshape(1, _N_PARAMS).astype(jnp.float32),
        ],
        axis=1,
    )                                            # (1, 19)

    return pl.pallas_call(
        hybrid_vqc_kernel,
        out_shape=jax.ShapeDtypeStruct((1, 1), jnp.float32),
        in_specs=[
            pl.BlockSpec(memory_space=pltpu.MemorySpace.VMEM),   # packed, whole array
        ],
        out_specs=pl.BlockSpec(memory_space=pltpu.MemorySpace.VMEM),
    )(packed)


def reference(x, params, fc_w, fc_b):
    """Gate-by-gate statevector simulation in plain JAX (real/imag form)."""
    t = x[0, 0] * 0.5
    re0, im0 = jnp.cos(t), jnp.zeros(())
    re1, im1 = jnp.sin(t), jnp.zeros(())
    for i in range(DEPTH):
        for j in range(2 * N_INPUT):
            h = params[i, j] * 0.5
            c, s = jnp.cos(h), jnp.sin(h)
            re0, im0, re1, im1 = (c * re0 + s * im1,
                                  c * im0 - s * re1,
                                  c * re1 + s * im0,
                                  c * im1 - s * re0)
    z = re0 * re0 + im0 * im0 - re1 * re1 - im1 * im1
    return fc_w * z + fc_b


if __name__ == "__main__":
    key = jax.random.PRNGKey(0)
    k_x, k_p, k_w, k_b = jax.random.split(key, 4)

    # deterministic "module parameters"
    params = jax.random.uniform(k_p, (DEPTH, 2 * N_INPUT), jnp.float32,
                                minval=0.0, maxval=2.0 * jnp.pi)  # TorchLayer default init
    fc_w = jax.random.uniform(k_w, (1, 1), jnp.float32, minval=-1.0, maxval=1.0)
    fc_b = jax.random.uniform(k_b, (1, 1), jnp.float32, minval=-1.0, maxval=1.0)

    # deterministic example input: single sample with n_input=1 feature
    x = jax.random.uniform(k_x, (1, N_INPUT), jnp.float32, minval=-jnp.pi, maxval=jnp.pi)

    out = hybrid_vqc(x, params, fc_w, fc_b)
    out = jax.block_until_ready(out)

    ref = reference(x, params, fc_w, fc_b)
    assert out.shape == (1, 1)
    assert jnp.allclose(out, ref, atol=2e-5, rtol=2e-5), (out, ref)
    print("KERNEL_OK")
</pallas_src>

<mosaic_0001>
module attributes {stable_mosaic.version = 11 : i64} {
  func.func @hybrid_vqc_kernel(%arg0: memref<1x19xf32, #tpu.memory_space<vmem>>, %arg1: memref<1x1xf32, #tpu.memory_space<vmem>>) attributes {dimension_semantics = [], scalar_prefetch = 0 : i64, scratch_operands = 0 : i64, tpu.core_type = #tpu.core_type<tc>} {
    %c0 = arith.constant 0 : index
    %c0_0 = arith.constant 0 : index
    %0 = vector.load %arg0[%c0, %c0_0] : memref<1x19xf32, #tpu.memory_space<vmem>>, vector<1x19xf32>
    %1 = vector.extract_strided_slice %0 {offsets = [0, 0], sizes = [1, 1], strides = [1, 1]} : vector<1x19xf32> to vector<1x1xf32>
    %2 = vector.extract_strided_slice %0 {offsets = [0, 1], sizes = [1, 1], strides = [1, 1]} : vector<1x19xf32> to vector<1x1xf32>
    %3 = vector.extract_strided_slice %0 {offsets = [0, 2], sizes = [1, 1], strides = [1, 1]} : vector<1x19xf32> to vector<1x1xf32>
    %4 = vector.extract_strided_slice %0 {offsets = [0, 3], sizes = [1, 16], strides = [1, 1]} : vector<1x19xf32> to vector<1x16xf32>
    %cst = arith.constant dense<0.000000e+00> : vector<1xf32>
    %5 = vector.multi_reduction <add>, %4, %cst [1] : vector<1x16xf32> to vector<1xf32>
    %6 = vector.shape_cast %5 : vector<1xf32> to vector<1x1xf32>
    %cst_1 = arith.constant 0.159154937 : f32
    %7 = vector.broadcast %cst_1 : f32 to vector<1x1xf32>
    %8 = arith.mulf %6, %7 : vector<1x1xf32>
    %9 = math.roundeven %8 : vector<1x1xf32>
    %cst_2 = arith.constant 6.28318548 : f32
    %10 = vector.broadcast %cst_2 : f32 to vector<1x1xf32>
    %11 = arith.mulf %10, %9 : vector<1x1xf32>
    %12 = arith.subf %6, %11 : vector<1x1xf32>
    %13 = math.cos %1 : vector<1x1xf32>
    %14 = math.cos %12 : vector<1x1xf32>
    %15 = arith.mulf %13, %14 : vector<1x1xf32>
    %16 = arith.mulf %2, %15 : vector<1x1xf32>
    %17 = arith.addf %16, %3 : vector<1x1xf32>
    %c0_3 = arith.constant 0 : index
    %c0_4 = arith.constant 0 : index
    %18 = vector.load %arg1[%c0_3, %c0_4] : memref<1x1xf32, #tpu.memory_space<vmem>>, vector<1x1xf32>
    tpu.vector_store %arg1[%c0_3, %c0_4], %17 {strides = array<i32>} : memref<1x1xf32, #tpu.memory_space<vmem>>, vector<1x1xf32>,
    return
  }
}

</mosaic_0001>

<llo_original>
// kernel: hybrid_vqc.1
$region0: #{hybrid_vqc.1}
  #allocation0 [shape = 'u32[]', space=smem, size = 0x4, offset = 0x4, fixed_abs, tag = 'smem constant byte address 0x4 - core index']
  #allocation1 [shape = 'u32[144,128]{1,0:T(1,128)}', space=vmem, size = 0x12000, scoped, tag = 'internal scratch']
  %s0 = inlined_call_operand.vmem [shape: f32[1,19], index: 0, kind: input, shape index: {}]
  %s1 = inlined_call_operand.hbm [shape: f32[1,1], index: 1, kind: output, shape index: {}]
  %s2 = sld [smem:[#allocation0]]
  $region14: #{hybrid_vqc.1} parent=0
    _
  %s4 = ssub.s32 1, %s2
  %s5 = scalar_select 0, %s4, %s2
  $region1: #{hybrid_vqc.1} parent=0
    #allocation2 [shape = 'u8[512]{0}', space=vmem, size = 0x400, scoped, tag = 'output window, operand 0, single buffered']
    #allocation3 [shape = 's32[1]{0}', space=sflag, size = 0x4, scoped, tag = 'scoped memory for hybrid_vqc.1']
    %6 = vsyncpa [#allocation3], 0
    // Predicated region
    $region2: #{hybrid_vqc.1} parent=1 // pred_check
      _
    $region3: #{hybrid_vqc.1} parent=1 // pred_check_branch
      %8 = sbr.rel (0) target = $region5
    $region4: #{hybrid_vqc.1} parent=1 // pred_region
      _
    $region5: #{hybrid_vqc.1} parent=1 // pred_fallthru
      _
    %v9 = vld [vmem:[%s0] sm:$0x1]
    %v11 = vlaneseq
    %v12 = vshrl.u32 %v11, 7
    %v13 = vsub.s32 0, %v12
    %v14 = vrot.slane %v9, %v13
    %15 = vrot.lane.b32.xlu0 %v14, 125
    %v16 = vpop.permute.xlu0 %15
    %vm18 = vcmask 122880
    %v19 = vsel %vm18, %v16, 0.0
    %20 = vadd.xlane.f32.xlu0 %v19
    %v21 = vpop.xlane.xlu0 %20
    %v22 = vmul.f32 %v21, 0.15915494
    %v23 = vround.ne.pseudo %v22
    %v24 = vmul.f32 %v23, 6.2831855
    %v25 = vsub.f32 %v21, %v24
    %v26 = vand.u32 2147483647, %v9
    %vm27 = vcmp.le.f32.partialorder %v26, 0.7853982
    %vm28 = vcmp.lt.s32.totalorder %v9, 0
    %v29 = vand.u32 %v9, 2139095040
    %v30 = vshrl.u32 %v29, 23
    %v31 = vsub.s32 %v30, 127
    %v32 = vand.u32 2147483647, %v9
    %v33 = vand.u32 %v32, 8388607
    %v34 = vor.u32 %v33, 8388608
    %v35 = vsub.s32 0, %v34
    %v36 = vadd.s32 %v31, 1
    %vm37 = vcmp.gt.s32.totalorder %v36, 0
    %v38 = vsel %vm37, %v36, 0
    %v39 = vshrl.u32 %v38, 5
    %v40 = vand.u32 %v38, 31
    %v41 = vsub.s32 32, %v40
    %v42 = vshrl.u32 683565275, %v41
    %v43 = vshll.u32 683565275, %v40
    %v44 = vshrl.u32 2475754826, %v41
    %v45 = vor.u32 %v43, %v44
    %v46 = vshll.u32 2475754826, %v40
    %v47 = vshrl.u32 2131351028, %v41
    %v48 = vor.u32 %v46, %v47
    %v49 = vshll.u32 2131351028, %v40
    %v50 = vshrl.u32 2102212464, %v41
    %v51 = vor.u32 %v49, %v50
    %v52 = vshll.u32 2102212464, %v40
    %v53 = vshrl.u32 920167782, %v41
    %v54 = vor.u32 %v52, %v53
    %v55 = vshll.u32 920167782, %v40
    %v56 = vshrl.u32 1326507024, %v41
    %v57 = vor.u32 %v55, %v56
    %vm58 = vcmp.lt.s32.totalorder %v39, 1
    %vm59 = vcmp.lt.s32.totalorder %v39, 2
    %vm60 = vcmp.lt.s32.totalorder %v39, 3
    %vm61 = vcmp.lt.s32.totalorder %v39, 4
    %v62 = vsel %vm58, %v42, %v45
    %v63 = vsel %vm61, %v51, 2102212464
    %v64 = vsel %vm60, %v48, %v63
    %v65 = vsel %vm59, %v62, %v64
    %v66 = vsel %vm58, %v45, %v48
    %v67 = vsel %vm61, %v54, 920167782
    %v68 = vsel %vm60, %v51, %v67
    %v69 = vsel %vm59, %v66, %v68
    %v70 = vsel %vm58, %v48, %v51
    %v71 = vsel %vm61, %v57, 1326507024
    %v72 = vsel %vm60, %v54, %v71
    %v73 = vsel %vm59, %v70, %v72
    %v74 = vshll.u32 %v34, 8
    %v75 = vmul.u32.u64.compose %v74, %v73
    %v76 = vextract.low.u32 %v75
    %v77 = vextract.high.u32 %v75
    %v78 = vmul.u32.u64.compose %v74, %v69
    %v79 = vextract.low.u32 %v78
    %v80 = vextract.high.u32 %v78
    %v81 = vmul.u32 %v74, %v65
    %v82 = vadd.s32 %v77, %v79
    %vm83 = vc.u32 %v77, %v79
    %v84 = vadd.s32 %v80, 1
    %v85 = vsel %vm83, %v84, %v80
    %v86 = vadd.s32 %v81, %v85
    %v87 = vadd.s32 %v86, 536870912
    %v88 = vshrl.u32 %v87, 30
    %v89 = vshll.u32 %v88, 30
    %v90 = vsub.s32 %v86, %v89
    %vm91 = vcmp.lt.s32.totalorder %v90, 0
    %v92 = vsub.s32 0, %v90
    %v93 = vsel %vm91, %v92, %v90
    %v94 = vclz %v93
    %v95 = vsub.s32 %v94, 2
    %vm96 = vcmp.gt.s32.totalorder 0, %v95
    %v97 = vsel %vm96, 0, %v95
    %v98 = vsub.s32 32, %v97
    %v99 = vshll.u32 %v90, %v97
    %v100 = vshrl.u32 %v82, %v98
    %v101 = vor.u32 %v99, %v100
    %v102 = vsub.s32 4294967266, %v97
    %v103 = vadd.s32 %v102, 127
    %v104 = vshll.u32 %v103, 23
    %v105 = vor.u32 4788187, %v104
    %v106 = vand.u32 2147483647, %v105
    %v108 = vcvt.s32.f32 %v101
    %v109 = vmul.f32 %v108, %v106
    %v110 = vxor.u32 %v109, 2147483648
    %v111 = vsel %vm28, %v110, %v109
    %v112 = vsub.s32 4, %v88
    %v113 = vsel %vm28, %v112, %v88
    %v114 = vsel %vm27, %v9, %v111
    %v115 = vsel %vm27, 0, %v113
    %v116 = vcosq.f32.pop %v114
    %v117 = vsinq.f32.pop %v114
    %vm118 = vweird.f32 %v9
    %v119 = vand.u32 %v115, 3
    %vm120 = vcmp.lt.s32.totalorder %v119, 2
    %vm121 = vcmp.eq.s32.totalorder %v119, 0
    %v122 = vxor.u32 %v117, 2147483648
    %v123 = vsel %vm121, %v116, %v122
    %vm124 = vcmp.eq.s32.totalorder %v119, 2
    %v125 = vxor.u32 %v116, 2147483648
    %v126 = vsel %vm124, %v125, %v117
    %v127 = vsel %vm120, %v123, %v126
    %v128 = vsel %vm118, nan, %v127
    %v129 = vand.u32 2147483647, %v25
    %vm130 = vcmp.le.f32.partialorder %v129, 0.7853982
    %vm131 = vcmp.lt.s32.totalorder %v25, 0
    %v132 = vand.u32 %v25, 2139095040
    %v133 = vshrl.u32 %v132, 23
    %v134 = vsub.s32 %v133, 127
    %v135 = vand.u32 2147483647, %v25
    %v136 = vand.u32 %v135, 8388607
    %v137 = vor.u32 %v136, 8388608
    %v138 = vsub.s32 0, %v137
    %v139 = vadd.s32 %v134, 1
    %vm140 = vcmp.gt.s32.totalorder %v139, 0
    %v141 = vsel %vm140, %v139, 0
    %v142 = vshrl.u32 %v141, 5
    %v143 = vand.u32 %v141, 31
    %v144 = vsub.s32 32, %v143
    %v145 = vshrl.u32 683565275, %v144
    %v146 = vshll.u32 683565275, %v143
    %v147 = vshrl.u32 2475754826, %v144
    %v148 = vor.u32 %v146, %v147
    %v149 = vshll.u32 2475754826, %v143
    %v150 = vshrl.u32 2131351028, %v144
    %v151 = vor.u32 %v149, %v150
    %v152 = vshll.u32 2131351028, %v143
    %v153 = vshrl.u32 2102212464, %v144
    %v154 = vor.u32 %v152, %v153
    %v155 = vshll.u32 2102212464, %v143
    %v156 = vshrl.u32 920167782, %v144
    %v157 = vor.u32 %v155, %v156
    %v158 = vshll.u32 920167782, %v143
    %v159 = vshrl.u32 1326507024, %v144
    %v160 = vor.u32 %v158, %v159
    %vm161 = vcmp.lt.s32.totalorder %v142, 1
    %vm162 = vcmp.lt.s32.totalorder %v142, 2
    %vm163 = vcmp.lt.s32.totalorder %v142, 3
    %vm164 = vcmp.lt.s32.totalorder %v142, 4
    %v165 = vsel %vm161, %v145, %v148
    %v166 = vsel %vm164, %v154, 2102212464
    %v167 = vsel %vm163, %v151, %v166
    %v168 = vsel %vm162, %v165, %v167
    %v169 = vsel %vm161, %v148, %v151
    %v170 = vsel %vm164, %v157, 920167782
    %v171 = vsel %vm163, %v154, %v170
    %v172 = vsel %vm162, %v169, %v171
    %v173 = vsel %vm161, %v151, %v154
    %v174 = vsel %vm164, %v160, 1326507024
    %v175 = vsel %vm163, %v157, %v174
    %v176 = vsel %vm162, %v173, %v175
    %v177 = vshll.u32 %v137, 8
    %v178 = vmul.u32.u64.compose %v177, %v176
    %v179 = vextract.low.u32 %v178
    %v180 = vextract.high.u32 %v178
    %v181 = vmul.u32.u64.compose %v177, %v172
    %v182 = vextract.low.u32 %v181
    %v183 = vextract.high.u32 %v181
    %v184 = vmul.u32 %v177, %v168
    %v185 = vadd.s32 %v180, %v182
    %vm186 = vc.u32 %v180, %v182
    %v187 = vadd.s32 %v183, 1
    %v188 = vsel %vm186, %v187, %v183
    %v189 = vadd.s32 %v184, %v188
    %v190 = vadd.s32 %v189, 536870912
    %v191 = vshrl.u32 %v190, 30
    %v192 = vshll.u32 %v191, 30
    %v193 = vsub.s32 %v189, %v192
    %vm194 = vcmp.lt.s32.totalorder %v193, 0
    %v195 = vsub.s32 0, %v193
    %v196 = vsel %vm194, %v195, %v193
    %v197 = vclz %v196
    %v198 = vsub.s32 %v197, 2
    %vm199 = vcmp.gt.s32.totalorder 0, %v198
    %v200 = vsel %vm199, 0, %v198
    %v201 = vsub.s32 32, %v200
    %v202 = vshll.u32 %v193, %v200
    %v203 = vshrl.u32 %v185, %v201
    %v204 = vor.u32 %v202, %v203
    %v205 = vsub.s32 4294967266, %v200
    %v206 = vadd.s32 %v205, 127
    %v207 = vshll.u32 %v206, 23
    %v208 = vor.u32 4788187, %v207
    %v209 = vand.u32 2147483647, %v208
    %v211 = vcvt.s32.f32 %v204
    %v212 = vmul.f32 %v211, %v209
    %v213 = vxor.u32 %v212, 2147483648
    %v214 = vsel %vm131, %v213, %v212
    %v215 = vsub.s32 4, %v191
    %v216 = vsel %vm131, %v215, %v191
    %v217 = vsel %vm130, %v25, %v214
    %v218 = vsel %vm130, 0, %v216
    %v219 = vcosq.f32.pop %v217
    %v220 = vsinq.f32.pop %v217
    %vm221 = vweird.f32 %v25
    %v222 = vand.u32 %v218, 3
    %vm223 = vcmp.lt.s32.totalorder %v222, 2
    %vm224 = vcmp.eq.s32.totalorder %v222, 0
    %v225 = vxor.u32 %v220, 2147483648
    %v226 = vsel %vm224, %v219, %v225
    %vm227 = vcmp.eq.s32.totalorder %v222, 2
    %v228 = vxor.u32 %v219, 2147483648
    %v229 = vsel %vm227, %v228, %v220
    %v230 = vsel %vm223, %v226, %v229
    %v231 = vsel %vm221, nan, %v230
    %v232 = vmul.f32 %v128, %v231
    %234 = vrot.lane.b32.xlu0 %v232, 1
    %v235 = vpop.permute.xlu0 %234
    %v237 = vmul.f32 %v9, %v235
    %238 = vrot.lane.b32.xlu0 %v9, 127
    %v239 = vpop.permute.xlu0 %238
    %v241 = vadd.f32 %v237, %v239
    %v243 = vlaneseq
    %v244 = vshrl.u32 %v243, 7
    %v245 = vsub.s32 0, %v244
    %v246 = vrot.slane %v241, %v245
    %247 = vrot.lane.b32.xlu0 %v246, 127
    %v248 = vpop.permute.xlu0 %247
    %vm250 = vcmask 0
    %251 = vst.msk [vmem:[#allocation2] sm:$0x1] %vm250, %v248
    // Predicated region
    $region6: #{hybrid_vqc.1} parent=1 // pred_check
      _
    $region7: #{hybrid_vqc.1} parent=1 // pred_check_branch
      %253 = sbr.rel (0) target = $region9
    $region8: #{hybrid_vqc.1} parent=1 // pred_region
      %s255 = ssub.s32 16, 16
      %256 = vsyncadd [#allocation3], %s255
      %s258 = sshll.u32 [#allocation2], 4
      %s259 = int_to_ptr.vmem [resolvable:$true] %s258
      %261 = dma.vmem_to_hbm [thread:$0]  %s259, 16, %s1, [#allocation3]
    $region9: #{hybrid_vqc.1} parent=1 // pred_fallthru
      _
    // Predicated region
    $region10: #{hybrid_vqc.1} parent=1 // pred_check
      _
    $region11: #{hybrid_vqc.1} parent=1 // pred_check_branch
      %263 = sbr.rel (0) target = $region13
    $region12: #{hybrid_vqc.1} parent=1 // pred_region
      %264 = dma.done [#allocation3], 16
    $region13: #{hybrid_vqc.1} parent=1 // pred_fallthru
      _
    %265 = vsyncpa [#allocation3], 1

</llo_original>
